<compile_context>
chip_gen: v7x
topology: tpu7x:2x2x1
jax: 0.10.0
libtpu: 0.0.40
codegen_flags: <defaults>
</compile_context>

<pallas_src>
import functools

import jax
import jax.numpy as jnp
from jax import lax
from jax.experimental import pallas as pl
from jax.experimental.pallas import tpu as pltpu

LANES = 128


def _round_up(x, m):
    return ((x + m - 1) // m) * m


def _focal_kernel(pred_ref, gt_ref, out_ref, acc_loss_ref, acc_pos_ref, *,
                  rows, block_rows, blocks_per_split):
    o = pl.program_id(0)   # split (parallel)
    i = pl.program_id(1)   # row-block within split (arbitrary / reduction)

    @pl.when(i == 0)
    def _init():
        acc_loss_ref[...] = jnp.zeros_like(acc_loss_ref)
        acc_pos_ref[...] = jnp.zeros_like(acc_pos_ref)

    # Logical (un-clamped) row range owned by this grid step.  Rows past the
    # end of the array (ragged last tile / overflow split) are replaced with
    # neutral sentinels so they contribute exactly zero.
    row_start = (o * blocks_per_split + i) * block_rows
    row_ids = row_start + lax.broadcasted_iota(
        jnp.int32, (block_rows, LANES), 0)
    valid = row_ids < rows

    pred = jnp.where(valid, pred_ref[...].astype(jnp.float32), 0.5)
    gt = jnp.where(valid, gt_ref[...].astype(jnp.float32), 2.0)

    pos_inds = (gt == 1.0).astype(jnp.float32)
    neg_inds = (gt < 1.0).astype(jnp.float32)
    one_m_gt = 1.0 - gt
    neg_weights = (one_m_gt * one_m_gt) * (one_m_gt * one_m_gt)  # (1-gt)^4
    one_m_pred = 1.0 - pred

    pos_loss = jnp.log(pred) * (one_m_pred * one_m_pred) * pos_inds
    neg_loss = jnp.log(one_m_pred) * (pred * pred) * neg_weights * neg_inds

    # Pure element-wise accumulation each step (hides under DMA); the
    # expensive cross-lane work happens once, below.
    acc_loss_ref[...] += pos_loss + neg_loss
    acc_pos_ref[...] += pos_inds

    @pl.when(i == pl.num_programs(1) - 1)
    def _finalize():
        out_ref[0, 0:1, :] = jnp.sum(acc_loss_ref[...], axis=0, keepdims=True)
        out_ref[0, 1:2, :] = jnp.sum(acc_pos_ref[...], axis=0, keepdims=True)


def focal_loss(pred, gt, *, block_rows=1024, num_splits=2):
    """Equivalent of FocalLoss().forward(pred, gt) for NCHW float inputs."""
    assert pred.shape == gt.shape

    # Keep f32 / bf16 as-is (bf16 halves HBM bytes; upcast happens in-kernel).
    if pred.dtype not in (jnp.float32, jnp.bfloat16):
        pred = pred.astype(jnp.float32)
    if gt.dtype not in (jnp.float32, jnp.bfloat16):
        gt = gt.astype(jnp.float32)

    pred_f = pred.reshape(-1)
    gt_f = gt.reshape(-1)
    total = pred_f.shape[0]

    rem = total % LANES
    if rem:
        # TODO(synk): rare ragged case (numel not a multiple of 128); this tiny
        # pad still costs one full-array copy via concatenate.
        pad = LANES - rem
        pred_f = jnp.concatenate(
            [pred_f, jnp.full((pad,), 0.5, pred_f.dtype)])
        gt_f = jnp.concatenate(
            [gt_f, jnp.full((pad,), 2.0, gt_f.dtype)])

    rows = pred_f.shape[0] // LANES
    pred2 = pred_f.reshape(rows, LANES)   # reshape only: no data movement
    gt2 = gt_f.reshape(rows, LANES)

    # Sublane granularity: 8 rows for 4-byte dtypes, 16 for 2-byte (bf16).
    sub = max(8 if pred2.dtype.itemsize == 4 else 16,
              8 if gt2.dtype.itemsize == 4 else 16)

    br = max(sub, min(_round_up(block_rows, sub), _round_up(rows, sub)))
    nblocks = -(-rows // br)
    ns = num_splits if nblocks >= num_splits else 1
    bps = -(-nblocks // ns)

    # Clamp the fetched block index so overflow iterations re-read a valid
    # block (its contribution is fully masked to zero in-kernel).
    def in_map(o, i):
        return (jnp.minimum(o * bps + i, nblocks - 1), 0)

    kernel = functools.partial(
        _focal_kernel, rows=rows, block_rows=br, blocks_per_split=bps)

    partials = pl.pallas_call(
        kernel,
        out_shape=jax.ShapeDtypeStruct((ns, 2, LANES), jnp.float32),
        grid_spec=pltpu.PrefetchScalarGridSpec(
            num_scalar_prefetch=0,
            grid=(ns, bps),
            in_specs=[
                pl.BlockSpec((br, LANES), in_map),
                pl.BlockSpec((br, LANES), in_map),
            ],
            out_specs=pl.BlockSpec((1, 2, LANES), lambda o, i: (o, 0, 0)),
            scratch_shapes=[
                pltpu.VMEM((br, LANES), jnp.float32),  # loss accumulator
                pltpu.VMEM((br, LANES), jnp.float32),  # pos-count accumulator
            ],
        ),
        compiler_params=pltpu.CompilerParams(
            dimension_semantics=("parallel", "arbitrary")),
    )(pred2, gt2)

    loss_sum = jnp.sum(partials[:, 0, :])   # sum(pos_loss) + sum(neg_loss)
    num_pos = jnp.sum(partials[:, 1, :])

    # num_pos == 0  =>  pos_loss sum is identically 0, so -loss_sum == -neg_loss.
    return jnp.where(
        num_pos == 0.0,
        -loss_sum,
        -loss_sum / jnp.maximum(num_pos, 1.0),
    )


def _reference(pred, gt):
    pred = pred.astype(jnp.float32)
    gt = gt.astype(jnp.float32)
    pos_inds = (gt == 1.0).astype(jnp.float32)
    neg_inds = (gt < 1.0).astype(jnp.float32)
    neg_weights = (1.0 - gt) ** 4
    pos_loss = jnp.log(pred) * (1.0 - pred) ** 2 * pos_inds
    neg_loss = jnp.log(1.0 - pred) * pred ** 2 * neg_weights * neg_inds
    num_pos = pos_inds.sum()
    pos_loss = pos_loss.sum()
    neg_loss = neg_loss.sum()
    return jnp.where(
        num_pos == 0.0, -neg_loss,
        -(pos_loss + neg_loss) / jnp.maximum(num_pos, 1.0))


if __name__ == "__main__":
    key = jax.random.PRNGKey(0)
    k1, k2 = jax.random.split(key)

    B, C, H, W = 2, 4, 16, 16
    # pred is a heatmap in (0, 1) (post-sigmoid); keep away from {0,1}.
    pred = jax.nn.sigmoid(jax.random.normal(k1, (B, C, H, W), jnp.float32))
    pred = jnp.clip(pred, 1e-4, 1.0 - 1e-4)

    # gt: gaussian-style heatmap with a few exact 1.0 peaks.
    gt = jax.random.uniform(k2, (B, C, H, W), jnp.float32) * 0.9
    gt = gt.at[0, 0, 3, 5].set(1.0)
    gt = gt.at[1, 2, 8, 10].set(1.0)

    out = focal_loss(pred, gt)
    out = jax.block_until_ready(out)

    ref = _reference(pred, gt)
    assert jnp.allclose(out, ref, rtol=1e-5, atol=1e-5), (out, ref)
    print("KERNEL_OK")
</pallas_src>

<mosaic_0001>
module attributes {stable_mosaic.version = 11 : i64} {
  func.func @_focal_kernel(%arg0: i32, %arg1: i32, %arg2: memref<16x128xf32, #tpu.memory_space<vmem>>, %arg3: memref<16x128xf32, #tpu.memory_space<vmem>>, %arg4: memref<1x2x128xf32, #tpu.memory_space<vmem>>, %arg5: memref<16x128xf32, #tpu.memory_space<vmem>>, %arg6: memref<16x128xf32, #tpu.memory_space<vmem>>) attributes {dimension_semantics = [#tpu.dimension_semantics<parallel>, #tpu.dimension_semantics<arbitrary>], iteration_bounds = array<i64: 1, 1>, scalar_prefetch = 0 : i64, scratch_operands = 2 : i64, tpu.core_type = #tpu.core_type<tc>, window_params = [{transform_indices = @transform_0, window_bounds = array<i64: 16, 128>}, {transform_indices = @transform_1, window_bounds = array<i64: 16, 128>}, {transform_indices = @transform_2, window_bounds = array<i64: 1, 2, 128>}]} {
    %c0_i32 = arith.constant 0 : i32
    %0 = arith.cmpi eq, %arg1, %c0_i32 : i32
    %1 = arith.extui %0 : i1 to i32
    %c0_i32_0 = arith.constant 0 : i32
    %2 = arith.cmpi ne, %1, %c0_i32_0 : i32
    scf.if %2 {
      %cst_20 = arith.constant 0.000000e+00 : f32
      %51 = vector.broadcast %cst_20 : f32 to vector<16x128xf32>
      %c0_21 = arith.constant 0 : index
      %c0_22 = arith.constant 0 : index
      %52 = vector.load %arg5[%c0_21, %c0_22] : memref<16x128xf32, #tpu.memory_space<vmem>>, vector<16x128xf32>
      tpu.vector_store %arg5[%c0_21, %c0_22], %51 {strides = array<i32>} : memref<16x128xf32, #tpu.memory_space<vmem>>, vector<16x128xf32>,
      %cst_23 = arith.constant 0.000000e+00 : f32
      %53 = vector.broadcast %cst_23 : f32 to vector<16x128xf32>
      %c0_24 = arith.constant 0 : index
      %c0_25 = arith.constant 0 : index
      %54 = vector.load %arg6[%c0_24, %c0_25] : memref<16x128xf32, #tpu.memory_space<vmem>>, vector<16x128xf32>
      tpu.vector_store %arg6[%c0_24, %c0_25], %53 {strides = array<i32>} : memref<16x128xf32, #tpu.memory_space<vmem>>, vector<16x128xf32>,
    } else {
    }
    %c1_i32 = arith.constant 1 : i32
    %3 = arith.muli %arg0, %c1_i32 : i32
    %4 = arith.addi %3, %arg1 : i32
    %c16_i32 = arith.constant 16 : i32
    %5 = arith.muli %4, %c16_i32 : i32
    %6 = tpu.iota {dimensions = array<i32: 0>} : vector<16x128xi32>
    %7 = vector.broadcast %5 : i32 to vector<16x128xi32>
    %8 = arith.addi %7, %6 : vector<16x128xi32>
    %c16_i32_1 = arith.constant 16 : i32
    %9 = vector.broadcast %c16_i32_1 : i32 to vector<16x128xi32>
    %10 = arith.cmpi slt, %8, %9 : vector<16x128xi32>
    %c0 = arith.constant 0 : index
    %c0_2 = arith.constant 0 : index
    %11 = vector.load %arg2[%c0, %c0_2] : memref<16x128xf32, #tpu.memory_space<vmem>>, vector<16x128xf32>
    %cst = arith.constant 5.000000e-01 : f32
    %12 = vector.broadcast %cst : f32 to vector<16x128xf32>
    %13 = arith.select %10, %11, %12 : vector<16x128xi1>, vector<16x128xf32>
    %c0_3 = arith.constant 0 : index
    %c0_4 = arith.constant 0 : index
    %14 = vector.load %arg3[%c0_3, %c0_4] : memref<16x128xf32, #tpu.memory_space<vmem>>, vector<16x128xf32>
    %cst_5 = arith.constant 2.000000e+00 : f32
    %15 = vector.broadcast %cst_5 : f32 to vector<16x128xf32>
    %16 = arith.select %10, %14, %15 : vector<16x128xi1>, vector<16x128xf32>
    %cst_6 = arith.constant 1.000000e+00 : f32
    %17 = vector.broadcast %cst_6 : f32 to vector<16x128xf32>
    %18 = arith.cmpf oeq, %16, %17 : vector<16x128xf32>
    %19 = arith.extui %18 : vector<16x128xi1> to vector<16x128xi32>
    %20 = arith.sitofp %19 : vector<16x128xi32> to vector<16x128xf32>
    %cst_7 = arith.constant 1.000000e+00 : f32
    %21 = vector.broadcast %cst_7 : f32 to vector<16x128xf32>
    %22 = arith.cmpf olt, %16, %21 : vector<16x128xf32>
    %23 = arith.extui %22 : vector<16x128xi1> to vector<16x128xi32>
    %24 = arith.sitofp %23 : vector<16x128xi32> to vector<16x128xf32>
    %cst_8 = arith.constant 1.000000e+00 : f32
    %25 = vector.broadcast %cst_8 : f32 to vector<16x128xf32>
    %26 = arith.subf %25, %16 : vector<16x128xf32>
    %27 = arith.mulf %26, %26 : vector<16x128xf32>
    %28 = arith.mulf %26, %26 : vector<16x128xf32>
    %29 = arith.mulf %27, %28 : vector<16x128xf32>
    %cst_9 = arith.constant 1.000000e+00 : f32
    %30 = vector.broadcast %cst_9 : f32 to vector<16x128xf32>
    %31 = arith.subf %30, %13 : vector<16x128xf32>
    %32 = math.log %13 : vector<16x128xf32>
    %33 = arith.mulf %31, %31 : vector<16x128xf32>
    %34 = arith.mulf %32, %33 : vector<16x128xf32>
    %35 = arith.mulf %34, %20 : vector<16x128xf32>
    %36 = math.log %31 : vector<16x128xf32>
    %37 = arith.mulf %13, %13 : vector<16x128xf32>
    %38 = arith.mulf %36, %37 : vector<16x128xf32>
    %39 = arith.mulf %38, %29 : vector<16x128xf32>
    %40 = arith.mulf %39, %24 : vector<16x128xf32>
    %c0_10 = arith.constant 0 : index
    %c0_11 = arith.constant 0 : index
    %41 = vector.load %arg5[%c0_10, %c0_11] : memref<16x128xf32, #tpu.memory_space<vmem>>, vector<16x128xf32>
    %42 = arith.addf %35, %40 : vector<16x128xf32>
    %43 = arith.addf %41, %42 : vector<16x128xf32>
    %c0_12 = arith.constant 0 : index
    %c0_13 = arith.constant 0 : index
    %44 = vector.load %arg5[%c0_12, %c0_13] : memref<16x128xf32, #tpu.memory_space<vmem>>, vector<16x128xf32>
    tpu.vector_store %arg5[%c0_12, %c0_13], %43 {strides = array<i32>} : memref<16x128xf32, #tpu.memory_space<vmem>>, vector<16x128xf32>,
    %c0_14 = arith.constant 0 : index
    %c0_15 = arith.constant 0 : index
    %45 = vector.load %arg6[%c0_14, %c0_15] : memref<16x128xf32, #tpu.memory_space<vmem>>, vector<16x128xf32>
    %46 = arith.addf %45, %20 : vector<16x128xf32>
    %c0_16 = arith.constant 0 : index
    %c0_17 = arith.constant 0 : index
    %47 = vector.load %arg6[%c0_16, %c0_17] : memref<16x128xf32, #tpu.memory_space<vmem>>, vector<16x128xf32>
    tpu.vector_store %arg6[%c0_16, %c0_17], %46 {strides = array<i32>} : memref<16x128xf32, #tpu.memory_space<vmem>>, vector<16x128xf32>,
    %c0_i32_18 = arith.constant 0 : i32
    %48 = arith.cmpi eq, %arg1, %c0_i32_18 : i32
    %49 = arith.extui %48 : i1 to i32
    %c0_i32_19 = arith.constant 0 : i32
    %50 = arith.cmpi ne, %49, %c0_i32_19 : i32
    scf.if %50 {
      %c0_20 = arith.constant 0 : index
      %c0_21 = arith.constant 0 : index
      %51 = vector.load %arg5[%c0_20, %c0_21] : memref<16x128xf32, #tpu.memory_space<vmem>>, vector<16x128xf32>
      %cst_22 = arith.constant dense<0.000000e+00> : vector<128xf32>
      %52 = vector.multi_reduction <add>, %51, %cst_22 [0] : vector<16x128xf32> to vector<128xf32>
      %53 = vector.shape_cast %52 : vector<128xf32> to vector<1x128xf32>
      %c0_23 = arith.constant 0 : index
      %c0_24 = arith.constant 0 : index
      %c0_25 = arith.constant 0 : index
      %54 = vector.load %arg4[%c0_23, %c0_24, %c0_25] : memref<1x2x128xf32, #tpu.memory_space<vmem>>, vector<1x1x128xf32>
      %55 = vector.shape_cast %54 : vector<1x1x128xf32> to vector<1x128xf32>
      %56 = vector.shape_cast %53 : vector<1x128xf32> to vector<1x1x128xf32>
      tpu.vector_store %arg4[%c0_23, %c0_24, %c0_25], %56 {strides = array<i32>} : memref<1x2x128xf32, #tpu.memory_space<vmem>>, vector<1x1x128xf32>,
      %c0_26 = arith.constant 0 : index
      %c0_27 = arith.constant 0 : index
      %57 = vector.load %arg6[%c0_26, %c0_27] : memref<16x128xf32, #tpu.memory_space<vmem>>, vector<16x128xf32>
      %cst_28 = arith.constant dense<0.000000e+00> : vector<128xf32>
      %58 = vector.multi_reduction <add>, %57, %cst_28 [0] : vector<16x128xf32> to vector<128xf32>
      %59 = vector.shape_cast %58 : vector<128xf32> to vector<1x128xf32>
      %c0_29 = arith.constant 0 : index
      %c1 = arith.constant 1 : index
      %c0_30 = arith.constant 0 : index
      %60 = vector.load %arg4[%c0_29, %c1, %c0_30] : memref<1x2x128xf32, #tpu.memory_space<vmem>>, vector<1x1x128xf32>
      %61 = vector.shape_cast %60 : vector<1x1x128xf32> to vector<1x128xf32>
      %62 = vector.shape_cast %59 : vector<1x128xf32> to vector<1x1x128xf32>
      tpu.vector_store %arg4[%c0_29, %c1, %c0_30], %62 {strides = array<i32>} : memref<1x2x128xf32, #tpu.memory_space<vmem>>, vector<1x1x128xf32>,
    } else {
    }
    return
  }
  func.func @transform_0(%arg0: i32, %arg1: i32) -> (i32, i32) {
    %c1_i32 = arith.constant 1 : i32
    %0 = arith.muli %arg0, %c1_i32 : i32
    %1 = arith.addi %0, %arg1 : i32
    %c0_i32 = arith.constant 0 : i32
    %2 = arith.minsi %1, %c0_i32 : i32
    %c0_i32_0 = arith.constant 0 : i32
    %c0_i32_1 = arith.constant 0 : i32
    return %2, %c0_i32_0 : i32, i32
  }
  func.func @transform_1(%arg0: i32, %arg1: i32) -> (i32, i32) {
    %c1_i32 = arith.constant 1 : i32
    %0 = arith.muli %arg0, %c1_i32 : i32
    %1 = arith.addi %0, %arg1 : i32
    %c0_i32 = arith.constant 0 : i32
    %2 = arith.minsi %1, %c0_i32 : i32
    %c0_i32_0 = arith.constant 0 : i32
    %c0_i32_1 = arith.constant 0 : i32
    return %2, %c0_i32_0 : i32, i32
  }
  func.func @transform_2(%arg0: i32, %arg1: i32) -> (i32, i32, i32) {
    %c0_i32 = arith.constant 0 : i32
    %c0_i32_0 = arith.constant 0 : i32
    %c0_i32_1 = arith.constant 0 : i32
    return %arg0, %c0_i32, %c0_i32_0 : i32, i32, i32
  }
}

</mosaic_0001>

<llo_original>
// kernel: tpu_custom_call.1
$region0: #{tpu_custom_call.1}
  #allocation0 [shape = 'u32[]', space=smem, size = 0x4, offset = 0x4, fixed_abs, tag = 'smem constant byte address 0x4 - core index']
  #allocation1 [shape = 'u32[144,128]{1,0:T(1,128)}', space=vmem, size = 0x12000, scoped, tag = 'internal scratch']
  #allocation2 [shape = 'f32[16,128]{1,0:T(8,128)}', space=vmem, size = 0x2000, scoped, tag = 'scratch operand']
  #allocation3 [shape = 'f32[16,128]{1,0:T(8,128)}', space=vmem, size = 0x2000, scoped, tag = 'scratch operand']
  %s0 = inlined_call_operand.hbm [shape: f32[16,128], index: 0, kind: input, shape index: {}]
  %s1 = inlined_call_operand.hbm [shape: f32[16,128], index: 1, kind: input, shape index: {}]
  %s2 = inlined_call_operand.hbm [shape: f32[1,2,128], index: 2, kind: output, shape index: {}]
  %s3 = sld [smem:[#allocation0]]
  $region34: #{tpu_custom_call.1} parent=0
    _
  %s5 = ssub.s32 1, %s3
  %s6 = scalar_select 0, %s5, %s3
  $region1: #{tpu_custom_call.1} parent=0
    #allocation4 [shape = 'u8[8192]{0}', space=vmem, size = 0x2000, scoped, tag = 'input window, operand 0, single buffered']
    #allocation5 [shape = 's32[1]{0}', space=sflag, size = 0x4, scoped, tag = 'scoped memory for tpu_custom_call.1']
    #allocation6 [shape = 's32[1]{0}', space=sflag, size = 0x4, scoped, tag = 'scoped memory for tpu_custom_call.1']
    #allocation7 [shape = 'u8[8192]{0}', space=vmem, size = 0x2000, scoped, tag = 'input window, operand 1, single buffered']
    #allocation8 [shape = 's32[1]{0}', space=sflag, size = 0x4, scoped, tag = 'scoped memory for tpu_custom_call.1']
    #allocation9 [shape = 'u8[1024]{0}', space=vmem, size = 0x400, scoped, tag = 'output window, operand 0, single buffered']
    %7 = vsyncpa [#allocation5], 0
    %8 = vsyncpa [#allocation8], 0
    %9 = vsyncpa [#allocation6], 0
    // Predicated region
    $region2: #{tpu_custom_call.1} parent=1 // pred_check
      _
    $region3: #{tpu_custom_call.1} parent=1 // pred_check_branch
      %11 = sbr.rel (0) target = $region5
    $region4: #{tpu_custom_call.1} parent=1 // pred_region
      %s12 = sadd.s32 0, 0
      %p13 = scmp.lt.s32.totalorder %s12, 0
      %s14 = scalar_select %p13, %s12, 0
      %s15 = smul.u32 2, %s14
      %s17 = ssub.s32 256, 256
      %18 = vsyncadd [#allocation5], %s17
      %s19 = smul.addr %s15, 128
      %s20 = scalar_lea.hbm %s0, %s19
      %s21 = sshll.u32 [#allocation4], 4
      %s22 = int_to_ptr.vmem [resolvable:$true] %s21
      %27 = dma.hbm_to_vmem [thread:$0]  %s20, 256, %s22, [#allocation5], 128, 128, 8
    $region5: #{tpu_custom_call.1} parent=1 // pred_fallthru
      _
    // Predicated region
    $region6: #{tpu_custom_call.1} parent=1 // pred_check
      _
    $region7: #{tpu_custom_call.1} parent=1 // pred_check_branch
      %29 = sbr.rel (0) target = $region9
    $region8: #{tpu_custom_call.1} parent=1 // pred_region
      %s30 = sadd.s32 0, 0
      %p31 = scmp.lt.s32.totalorder %s30, 0
      %s32 = scalar_select %p31, %s30, 0
      %s33 = smul.u32 2, %s32
      %s35 = ssub.s32 256, 256
      %36 = vsyncadd [#allocation8], %s35
      %s37 = smul.addr %s33, 128
      %s38 = scalar_lea.hbm %s1, %s37
      %s39 = sshll.u32 [#allocation7], 4
      %s40 = int_to_ptr.vmem [resolvable:$true] %s39
      %45 = dma.hbm_to_vmem [thread:$0]  %s38, 256, %s40, [#allocation8], 128, 128, 8
    $region9: #{tpu_custom_call.1} parent=1 // pred_fallthru
      _
    // Predicated region
    $region10: #{tpu_custom_call.1} parent=1 // pred_check
      _
    $region11: #{tpu_custom_call.1} parent=1 // pred_check_branch
      %47 = sbr.rel (0) target = $region13
    $region12: #{tpu_custom_call.1} parent=1 // pred_region
      %48 = dma.done [#allocation5], 256
    $region13: #{tpu_custom_call.1} parent=1 // pred_fallthru
      _
    // Predicated region
    $region14: #{tpu_custom_call.1} parent=1 // pred_check
      _
    $region15: #{tpu_custom_call.1} parent=1 // pred_check_branch
      %50 = sbr.rel (0) target = $region17
    $region16: #{tpu_custom_call.1} parent=1 // pred_region
      %51 = dma.done [#allocation8], 256
    $region17: #{tpu_custom_call.1} parent=1 // pred_fallthru
      _
    %s52 = sadd.s32 0, 0
    %p53 = scmp.lt.s32.totalorder %s52, 0
    %s54 = scalar_select %p53, %s52, 0
    %s55 = smul.u32 2, %s54
    %s56 = sadd.s32 0, 0
    %p57 = scmp.lt.s32.totalorder %s56, 0
    %s58 = scalar_select %p57, %s56, 0
    %s59 = smul.u32 2, %s58
    %p60 = scmp.eq.s32.totalorder 0, 0
    // Predicated region
    $region18: #{tpu_custom_call.1} parent=1 // pred_check
      %p61 = pneg %p60
    $region19: #{tpu_custom_call.1} parent=1 // pred_check_branch
      %63 = sbr.rel (%p61) target = $region21
    $region20: #{tpu_custom_call.1} parent=1 // pred_region
      %64 = vst [vmem:[#allocation2] sm:$0xff] 0.0
      %65 = vst [vmem:[#allocation2 + $0x8] sm:$0xff] 0.0
      %66 = vst [vmem:[#allocation3] sm:$0xff] 0.0
      %67 = vst [vmem:[#allocation3 + $0x8] sm:$0xff] 0.0
    $region21: #{tpu_custom_call.1} parent=1 // pred_fallthru
      _
    %s68 = sadd.s32 0, 0
    %s69 = smul.u32 %s68, 16
    %v70 = vlaneseq
    %v71 = vshrl.u32 %v70, 7
    %v72 = vadd.s32 %v71, 8
    %v73 = vstv %s69
    %v74 = vadd.s32 %v73, %v71
    %v75 = vadd.s32 %v73, %v72
    %vm76 = vcmp.lt.s32.totalorder %v74, 16
    %vm77 = vcmp.lt.s32.totalorder %v75, 16
    %v78 = vld [vmem:[#allocation4] sm:$0xff]
    %v79 = vld [vmem:[#allocation4 + $0x8] sm:$0xff]
    %v80 = vsel %vm76, %v78, 0.5
    %v81 = vsel %vm77, %v79, 0.5
    %v82 = vld [vmem:[#allocation7] sm:$0xff]
    %v83 = vld [vmem:[#allocation7 + $0x8] sm:$0xff]
    %v84 = vsel %vm76, %v82, 2.0
    %v85 = vsel %vm77, %v83, 2.0
    %vm86 = vcmp.eq.f32.partialorder %v84, 1.0
    %vm87 = vcmp.eq.f32.partialorder %v85, 1.0
    %v88 = vsel %vm86, 1, 0
    %v89 = vsel %vm87, 1, 0
    %v90 = vcvt.s32.f32 %v88
    %v91 = vcvt.s32.f32 %v89
    %vm92 = vcmp.lt.f32.partialorder %v84, 1.0
    %vm93 = vcmp.lt.f32.partialorder %v85, 1.0
    %v94 = vsel %vm92, 1, 0
    %v95 = vsel %vm93, 1, 0
    %v96 = vcvt.s32.f32 %v94
    %v97 = vcvt.s32.f32 %v95
    %v98 = vsub.f32 1.0, %v84
    %v99 = vsub.f32 1.0, %v85
    %v100 = vmul.f32 %v98, %v98
    %v101 = vmul.f32 %v99, %v99
    %v102 = vmul.f32 %v100, %v100
    %v103 = vmul.f32 %v101, %v101
    %v104 = vsub.f32 1.0, %v80
    %v105 = vsub.f32 1.0, %v81
    %v106 = vlog2.pop %v80
    %v107 = vmul.f32 %v106, 0.6931472
    %v108 = vlog2.pop %v81
    %v109 = vmul.f32 %v108, 0.6931472
    %v110 = vmul.f32 %v104, %v104
    %v111 = vmul.f32 %v105, %v105
    %v112 = vmul.f32 %v107, %v110
    %v113 = vmul.f32 %v109, %v111
    %v114 = vmul.f32 %v112, %v90
    %v115 = vmul.f32 %v113, %v91
    %v116 = vlog2.pop %v104
    %v117 = vmul.f32 %v116, 0.6931472
    %v118 = vlog2.pop %v105
    %v119 = vmul.f32 %v118, 0.6931472
    %v120 = vmul.f32 %v80, %v80
    %v121 = vmul.f32 %v81, %v81
    %v122 = vmul.f32 %v117, %v120
    %v123 = vmul.f32 %v119, %v121
    %v124 = vmul.f32 %v122, %v102
    %v125 = vmul.f32 %v123, %v103
    %v126 = vmul.f32 %v124, %v96
    %v127 = vmul.f32 %v125, %v97
    %v128 = vld [vmem:[#allocation2] sm:$0xff]
    %v129 = vld [vmem:[#allocation2 + $0x8] sm:$0xff]
    %v130 = vadd.f32 %v114, %v126
    %v131 = vadd.f32 %v115, %v127
    %v132 = vadd.f32 %v128, %v130
    %v133 = vadd.f32 %v129, %v131
    %134 = vst [vmem:[#allocation2] sm:$0xff] %v132
    %135 = vst [vmem:[#allocation2 + $0x8] sm:$0xff] %v133
    %v136 = vld [vmem:[#allocation3] sm:$0xff]
    %v137 = vld [vmem:[#allocation3 + $0x8] sm:$0xff]
    %v138 = vadd.f32 %v136, %v90
    %v139 = vadd.f32 %v137, %v91
    %140 = vst [vmem:[#allocation3] sm:$0xff] %v138
    %141 = vst [vmem:[#allocation3 + $0x8] sm:$0xff] %v139
    // Predicated region
    $region22: #{tpu_custom_call.1} parent=1 // pred_check
      %p142 = pneg %p60
    $region23: #{tpu_custom_call.1} parent=1 // pred_check_branch
      %144 = sbr.rel (%p142) target = $region25
    $region24: #{tpu_custom_call.1} parent=1 // pred_region
      %v145 = vld [vmem:[#allocation2] sm:$0xff]
      %v146 = vld [vmem:[#allocation2 + $0x8] sm:$0xff]
      %v147 = vadd.f32 %v145, %v146
      %v148 = vrot.slane %v147, 4
      %v149 = vadd.f32 %v147, %v148
      %v150 = vrot.slane %v149, 2
      %v151 = vadd.f32 %v149, %v150
      %v152 = vrot.slane %v151, 1
      %v153 = vadd.f32 %v151, %v152
      %154 = vst [vmem:[#allocation9] sm:$0x1] %v153
      %v155 = vld [vmem:[#allocation3] sm:$0xff]
      %v156 = vld [vmem:[#allocation3 + $0x8] sm:$0xff]
      %v157 = vadd.f32 %v155, %v156
      %v158 = vrot.slane %v157, 4
      %v159 = vadd.f32 %v157, %v158
      %v160 = vrot.slane %v159, 2
      %v161 = vadd.f32 %v159, %v160
      %v162 = vrot.slane %v161, 1
      %v163 = vadd.f32 %v161, %v162
      %164 = vst [vmem:[#allocation9 + $0x1] sm:$0x1] %v163
    $region25: #{tpu_custom_call.1} parent=1 // pred_fallthru
      _
    // Predicated region
    $region26: #{tpu_custom_call.1} parent=1 // pred_check
      _
    $region27: #{tpu_custom_call.1} parent=1 // pred_check_branch
      %166 = sbr.rel (0) target = $region29
    $region28: #{tpu_custom_call.1} parent=1 // pred_region
      %s168 = ssub.s32 32, 32
      %169 = vsyncadd [#allocation6], %s168
      %s171 = sshll.u32 [#allocation9], 4
      %s172 = int_to_ptr.vmem [resolvable:$true] %s171
      %174 = dma.vmem_to_hbm [thread:$0]  %s172, 32, %s2, [#allocation6]
    $region29: #{tpu_custom_call.1} parent=1 // pred_fallthru
      _
    // Predicated region
    $region30: #{tpu_custom_call.1} parent=1 // pred_check
      _
    $region31: #{tpu_custom_call.1} parent=1 // pred_check_branch
      %176 = sbr.rel (0) target = $region33
    $region32: #{tpu_custom_call.1} parent=1 // pred_region
      %177 = dma.done [#allocation6], 32
    $region33: #{tpu_custom_call.1} parent=1 // pred_fallthru
      _
    %178 = vsyncpa [#allocation5], 1
    %179 = vsyncpa [#allocation8], 1
    %180 = vsyncpa [#allocation6], 1

</llo_original>
